<compile_context>
chip_gen: v6e
topology: v6e:2x2x1
jax: 0.10.0
libtpu: 0.0.40
codegen_flags: <defaults>
</compile_context>

<pallas_src>
import numpy as np
import jax
import jax.numpy as jnp
from jax.experimental import pallas as pl
from jax.experimental.pallas import tpu as pltpu

ALPHA = 0.5
BETA = 1.0

_H_LO = 1e-12          # matches the reference's +1e-12 epsilon on log(h)
_H_HI = 1.0 - 1e-6     # guards log1p(-h) against h == 1.0 (sigmoid saturation)


def _round_up(x, m):
    return (x + m - 1) // m * m


def _vmem_budget_bytes():
    """Per-generation VMEM budget: ~70% of physical, capped at 96 MiB.
    v5e/v6e (128 MiB phys) -> ~90 MiB, v7x (64 MiB phys) -> ~45 MiB."""
    try:
        phys = pltpu.get_tpu_info().vmem_capacity_bytes
    except Exception:
        phys = 64 * 1024 * 1024  # conservative (v7x-sized) fallback
    return min(int(phys * 0.7), 96 * 1024 * 1024)


def _choose_tiling(n, t_pad):
    """Pick (tile_n, num_blocks, n_pad, vmem_limit) for the 1-D batch grid."""
    vmem_limit = _vmem_budget_bytes()
    # Per-lane footprint estimate: double-buffered h block (2 * T * 4B) plus ~6 live
    # full-tile f32/i32 temporaries inside the kernel (log1mh, iota, masks, ...).
    bytes_per_lane = 4 * t_pad * (2 + 6)
    cap = (vmem_limit // 2) // bytes_per_lane
    cap = max(512, min(32768, (cap // 128) * 128))

    n128 = _round_up(max(n, 1), 128)
    num_blocks = pl.cdiv(n128, cap)
    if n128 >= 2048:
        # Keep at least 2 blocks so the "parallel" grid axis can shard across the
        # two TensorCores on v7x (harmless serial loop on single-TC v5e/v6e).
        num_blocks = max(num_blocks, 2)
    tile_n = _round_up(pl.cdiv(n128, num_blocks), 128)
    num_blocks = pl.cdiv(n128, tile_n)
    n_pad = num_blocks * tile_n
    return tile_n, num_blocks, n_pad, vmem_limit


def _make_kernel(n_valid, tile_n):
    def kernel(h_ref, meta_ref, out_ref):
        pid = pl.program_id(0)

        # (T_pad, tile_n) hazards, clamped once so every log/ log1p stays finite
        # (also makes padded lanes / padded time rows safe regardless of pad value).
        h = jnp.clip(h_ref[...], _H_LO, _H_HI)

        meta = meta_ref[...]                         # (2, tile_n) f32
        idx = meta[0:1, :].astype(jnp.int32)         # (1, tile_n) duration indices
        ev = meta[1:2, :]                            # (1, tile_n) event indicators

        # Batch-padding mask derived in-kernel (no extra HBM stream).
        lane = jax.lax.broadcasted_iota(jnp.int32, (1, tile_n), 1)
        valid = (pid * tile_n + lane) < n_valid      # (1, tile_n) bool

        row = jax.lax.broadcasted_iota(jnp.int32, h.shape, 0)   # time index per elem

        # --- single full-tile transcendental ---
        log1mh = jnp.log1p(-h)                                   # (T_pad, tile_n)

        at_idx = row == idx
        # Conditional log-survival S_i = sum_{k <= idx_i - 2} log(1 - h[i, k])
        S = jnp.sum(jnp.where(row < idx - 1, log1mh, 0.0), axis=0, keepdims=True)
        # Gathers at the event time (reuse h / log1mh, no full-tile log of h).
        h_at = jnp.sum(jnp.where(at_idx, h, 0.0), axis=0, keepdims=True)
        log1mh_at = jnp.sum(jnp.where(at_idx, log1mh, 0.0), axis=0, keepdims=True)
        # Prefix sum of log(1-h) up to and including idx (for the BCE rewrite).
        nll_cum = jnp.sum(jnp.where(row <= idx, log1mh, 0.0), axis=0, keepdims=True)

        # --- per-sample transcendentals: O(1/T) of full-tile work ---
        log_hl = jnp.log(jnp.maximum(h_at, _H_LO))               # log h[i, idx_i]
        log_Wt = jnp.log(jnp.maximum(1.0 - jnp.exp(S), 1e-8))

        # event_time_loss partial (uncensored samples only) + event count
        ev_mask = jnp.logical_and(valid, ev == 1.0)
        sum_Lz = jnp.sum(jnp.where(ev_mask, -(log_hl + S), 0.0))
        n_ev = jnp.sum(jnp.where(valid, ev, 0.0))

        # censoring loss partial
        c = 1.0 - ev
        Lc_i = -(c * S + (1.0 - c) * log_Wt)
        sum_Lc = jnp.sum(jnp.where(valid, Lc_i, 0.0))

        # nll_logistic_hazard partial: BCE-with-logits on inverse_sigmoid(h) with the
        # event scattered at idx, rewritten in probability space around log1mh:
        #   nll_i = -sum_{j<=idx} log(1-h[i,j]) + ev_i * (log(1-h_at) - log(h_at))
        nll_i = -nll_cum + ev * (log1mh_at - log_hl)
        sum_nll = jnp.sum(jnp.where(valid, nll_i, 0.0))

        lane_o = jax.lax.broadcasted_iota(jnp.int32, out_ref.shape, 1)
        out_ref[...] = (jnp.where(lane_o == 0, sum_Lz, 0.0)
                        + jnp.where(lane_o == 1, n_ev, 0.0)
                        + jnp.where(lane_o == 2, sum_Lc, 0.0)
                        + jnp.where(lane_o == 3, sum_nll, 0.0))

    return kernel


def loss_td_surv(preds, target, alpha=ALPHA, beta=BETA):
    """preds: (N, T, 1) f32 hazards; target: (N, 3) = [idx_durations, events, interval_frac]."""
    h = preds[..., 0].astype(jnp.float32)                 # (N, T)
    N, T = h.shape
    idx_f = target[:, 0].astype(jnp.float32)              # exact for T < 2^24
    ev = target[:, 1].astype(jnp.float32)

    T_pad = _round_up(T, 8)
    tile_n, num_blocks, n_pad, vmem_limit = _choose_tiling(N, T_pad)

    # Lane-dense layout: samples on lanes, durations on sublanes; pad only to the
    # chosen tiling (batch padding masked in-kernel via program_id).
    # TODO(synk): upstream should emit hazards already as (T, N); this transpose+pad
    # costs one extra HBM read+write of h outside the (memory-bound) kernel.
    h_t = jnp.pad(h.T, ((0, T_pad - T), (0, n_pad - N)))               # (T_pad, n_pad)
    meta = jnp.pad(jnp.stack([idx_f, ev], axis=0), ((0, 0), (0, n_pad - N)))  # (2, n_pad)

    cost = pl.CostEstimate(
        flops=int(16 * T_pad * n_pad),
        transcendentals=int(T_pad * n_pad + 3 * n_pad),
        bytes_accessed=int(4 * ((T_pad + 2) * n_pad + 128 * num_blocks)),
    )

    partial = pl.pallas_call(
        _make_kernel(N, tile_n),
        out_shape=jax.ShapeDtypeStruct((num_blocks, 128), jnp.float32),
        grid=(num_blocks,),
        in_specs=[
            pl.BlockSpec((T_pad, tile_n), lambda i: (0, i)),   # hazards (T, N) tiles
            pl.BlockSpec((2, tile_n), lambda i: (0, i)),       # [idx; events]
        ],
        # Each grid step owns its own output row -> no cross-step dependency, so the
        # grid axis is fully parallel (shards across both TCs on v7x).
        out_specs=pl.BlockSpec((1, 128), lambda i: (i, 0)),
        compiler_params=pltpu.CompilerParams(
            dimension_semantics=("parallel",),
            vmem_limit_bytes=vmem_limit,
        ),
        cost_estimate=cost,
    )(h_t, meta)

    sums = jnp.sum(partial, axis=0)                        # (128,)
    L_z = sums[0] / jnp.maximum(sums[1], 1.0)              # guard all-censored batches
    L_c = sums[2] / N
    nll = sums[3] / N
    return alpha * L_z + (1.0 - alpha) * L_c + beta * nll


def _ref_loss(h, idx, ev, alpha=ALPHA, beta=BETA):
    """NumPy reference mirroring the PyTorch module (loops and all)."""
    h = np.asarray(h, dtype=np.float64)
    idx = np.asarray(idx, dtype=np.int64)
    ev = np.asarray(ev, dtype=np.float64)
    N, T = h.shape

    def cond_log_surv(hm, idxm):
        M = hm.shape[0]
        hp = np.concatenate([np.zeros((M, 1)), hm], axis=1)   # pad_col(where='start')
        out = np.zeros_like(hm)
        for i, d in enumerate(idxm):
            out[i, :d] = np.log(1.0 - hp[i, :d])
        return out.sum(1)

    sel = ev == 1.0
    h_e, idx_e = h[sel], idx[sel]
    h_l = h_e[np.arange(h_e.shape[0]), idx_e]
    L_z = np.mean(-(np.log(h_l) + cond_log_surv(h_e, idx_e)))

    log_St = cond_log_surv(h, idx)
    log_Wt = np.log(np.clip(1.0 - np.exp(log_St), 1e-8, None))
    c = 1.0 - ev
    L_c = -np.mean(c * log_St + (1.0 - c) * log_Wt)

    phi = np.log((h + 1e-12) / (1.0 - h + 1e-12))
    y = np.zeros_like(h)
    y[np.arange(N), idx] = ev
    bce = np.maximum(phi, 0.0) - phi * y + np.log1p(np.exp(-np.abs(phi)))
    nll = np.mean(np.cumsum(bce, 1)[np.arange(N), idx])
    return alpha * L_z + (1.0 - alpha) * L_c + beta * nll


if __name__ == "__main__":
    key = jax.random.PRNGKey(0)
    N, T = 8, 16
    k1, k2, k3 = jax.random.split(key, 3)

    h = jax.random.uniform(k1, (N, T), jnp.float32, minval=0.05, maxval=0.9)
    preds = h[..., None]                                   # (N, T, 1)
    idx = jax.random.randint(k2, (N,), 0, T)
    ev = (jax.random.uniform(k3, (N,)) > 0.4).astype(jnp.float32)
    ev = ev.at[0].set(1.0)                                 # ensure >=1 uncensored sample
    interval_frac = jnp.zeros((N,), jnp.float32)
    target = jnp.stack([idx.astype(jnp.float32), ev, interval_frac], axis=1)  # (N, 3)

    loss = jax.block_until_ready(loss_td_surv(preds, target))

    expected = _ref_loss(np.array(h), np.array(idx), np.array(ev))
    assert np.allclose(float(loss), expected, rtol=1e-4, atol=1e-4), (float(loss), expected)
    print("KERNEL_OK")
</pallas_src>

<mosaic_0001>
module attributes {stable_mosaic.version = 11 : i64} {
  func.func @kernel(%arg0: i32, %arg1: memref<16x128xf32, #tpu.memory_space<vmem>>, %arg2: memref<2x128xf32, #tpu.memory_space<vmem>>, %arg3: memref<1x128xf32, #tpu.memory_space<vmem>>) attributes {dimension_semantics = [#tpu.dimension_semantics<parallel>], iteration_bounds = array<i64: 1>, scalar_prefetch = 0 : i64, scratch_operands = 0 : i64, tpu.core_type = #tpu.core_type<tc>, window_params = [{transform_indices = @transform_0, window_bounds = array<i64: 16, 128>}, {transform_indices = @transform_1, window_bounds = array<i64: 2, 128>}, {transform_indices = @transform_2, window_bounds = array<i64: 1, 128>}]} {
    %c0 = arith.constant 0 : index
    %c0_0 = arith.constant 0 : index
    %0 = vector.load %arg1[%c0, %c0_0] : memref<16x128xf32, #tpu.memory_space<vmem>>, vector<16x128xf32>
    %cst = arith.constant 9.99999996E-13 : f32
    %cst_1 = arith.constant 0.999998986 : f32
    %1 = vector.broadcast %cst : f32 to vector<16x128xf32>
    %2 = arith.maximumf %1, %0 : vector<16x128xf32>
    %3 = vector.broadcast %cst_1 : f32 to vector<16x128xf32>
    %4 = arith.minimumf %3, %2 : vector<16x128xf32>
    %c0_2 = arith.constant 0 : index
    %c0_3 = arith.constant 0 : index
    %5 = vector.load %arg2[%c0_2, %c0_3] : memref<2x128xf32, #tpu.memory_space<vmem>>, vector<2x128xf32>
    %6 = vector.extract_strided_slice %5 {offsets = [0, 0], sizes = [1, 128], strides = [1, 1]} : vector<2x128xf32> to vector<1x128xf32>
    %7 = arith.fptosi %6 : vector<1x128xf32> to vector<1x128xi32>
    %8 = vector.extract_strided_slice %5 {offsets = [1, 0], sizes = [1, 128], strides = [1, 1]} : vector<2x128xf32> to vector<1x128xf32>
    %9 = tpu.iota {dimensions = array<i32: 1>} : vector<1x128xi32>
    %c128_i32 = arith.constant 128 : i32
    %10 = arith.muli %arg0, %c128_i32 : i32
    %11 = vector.broadcast %10 : i32 to vector<1x128xi32>
    %12 = arith.addi %11, %9 : vector<1x128xi32>
    %c8_i32 = arith.constant 8 : i32
    %13 = vector.broadcast %c8_i32 : i32 to vector<1x128xi32>
    %14 = arith.cmpi slt, %12, %13 : vector<1x128xi32>
    %15 = tpu.iota {dimensions = array<i32: 0>} : vector<16x128xi32>
    %cst_4 = arith.constant 0.000000e+00 : f32
    %16 = vector.broadcast %cst_4 : f32 to vector<16x128xf32>
    %17 = arith.subf %16, %4 : vector<16x128xf32>
    %18 = math.log1p %17 : vector<16x128xf32>
    %19 = vector.broadcast %7 : vector<1x128xi32> to vector<16x128xi32>
    %20 = arith.cmpi eq, %15, %19 : vector<16x128xi32>
    %c1_i32 = arith.constant 1 : i32
    %21 = vector.broadcast %c1_i32 : i32 to vector<1x128xi32>
    %22 = arith.subi %7, %21 : vector<1x128xi32>
    %23 = vector.broadcast %22 : vector<1x128xi32> to vector<16x128xi32>
    %24 = arith.cmpi slt, %15, %23 : vector<16x128xi32>
    %cst_5 = arith.constant 0.000000e+00 : f32
    %25 = vector.broadcast %cst_5 : f32 to vector<16x128xf32>
    %26 = arith.select %24, %18, %25 : vector<16x128xi1>, vector<16x128xf32>
    %cst_6 = arith.constant dense<0.000000e+00> : vector<128xf32>
    %27 = vector.multi_reduction <add>, %26, %cst_6 [0] : vector<16x128xf32> to vector<128xf32>
    %28 = vector.shape_cast %27 : vector<128xf32> to vector<1x128xf32>
    %cst_7 = arith.constant 0.000000e+00 : f32
    %29 = vector.broadcast %cst_7 : f32 to vector<16x128xf32>
    %30 = arith.select %20, %4, %29 : vector<16x128xi1>, vector<16x128xf32>
    %cst_8 = arith.constant dense<0.000000e+00> : vector<128xf32>
    %31 = vector.multi_reduction <add>, %30, %cst_8 [0] : vector<16x128xf32> to vector<128xf32>
    %32 = vector.shape_cast %31 : vector<128xf32> to vector<1x128xf32>
    %cst_9 = arith.constant 0.000000e+00 : f32
    %33 = vector.broadcast %cst_9 : f32 to vector<16x128xf32>
    %34 = arith.select %20, %18, %33 : vector<16x128xi1>, vector<16x128xf32>
    %cst_10 = arith.constant dense<0.000000e+00> : vector<128xf32>
    %35 = vector.multi_reduction <add>, %34, %cst_10 [0] : vector<16x128xf32> to vector<128xf32>
    %36 = vector.shape_cast %35 : vector<128xf32> to vector<1x128xf32>
    %37 = vector.broadcast %7 : vector<1x128xi32> to vector<16x128xi32>
    %38 = arith.cmpi sle, %15, %37 : vector<16x128xi32>
    %cst_11 = arith.constant 0.000000e+00 : f32
    %39 = vector.broadcast %cst_11 : f32 to vector<16x128xf32>
    %40 = arith.select %38, %18, %39 : vector<16x128xi1>, vector<16x128xf32>
    %cst_12 = arith.constant dense<0.000000e+00> : vector<128xf32>
    %41 = vector.multi_reduction <add>, %40, %cst_12 [0] : vector<16x128xf32> to vector<128xf32>
    %42 = vector.shape_cast %41 : vector<128xf32> to vector<1x128xf32>
    %cst_13 = arith.constant 9.99999996E-13 : f32
    %43 = vector.broadcast %cst_13 : f32 to vector<1x128xf32>
    %44 = arith.maximumf %32, %43 : vector<1x128xf32>
    %45 = math.log %44 : vector<1x128xf32>
    %46 = math.exp %28 : vector<1x128xf32>
    %cst_14 = arith.constant 1.000000e+00 : f32
    %47 = vector.broadcast %cst_14 : f32 to vector<1x128xf32>
    %48 = arith.subf %47, %46 : vector<1x128xf32>
    %cst_15 = arith.constant 9.99999993E-9 : f32
    %49 = vector.broadcast %cst_15 : f32 to vector<1x128xf32>
    %50 = arith.maximumf %48, %49 : vector<1x128xf32>
    %51 = math.log %50 : vector<1x128xf32>
    %cst_16 = arith.constant 1.000000e+00 : f32
    %52 = vector.broadcast %cst_16 : f32 to vector<1x128xf32>
    %53 = arith.cmpf oeq, %8, %52 : vector<1x128xf32>
    %54 = arith.andi %14, %53 : vector<1x128xi1>
    %55 = arith.addf %45, %28 : vector<1x128xf32>
    %cst_17 = arith.constant 0.000000e+00 : f32
    %56 = vector.broadcast %cst_17 : f32 to vector<1x128xf32>
    %57 = arith.subf %56, %55 : vector<1x128xf32>
    %cst_18 = arith.constant 0.000000e+00 : f32
    %58 = vector.broadcast %cst_18 : f32 to vector<1x128xf32>
    %59 = arith.select %54, %57, %58 : vector<1x128xi1>, vector<1x128xf32>
    %60 = vector.shape_cast %59 : vector<1x128xf32> to vector<1x1x128xf32>
    %cst_19 = arith.constant dense<0.000000e+00> : vector<1xf32>
    %61 = vector.multi_reduction <add>, %60, %cst_19 [1, 2] : vector<1x1x128xf32> to vector<1xf32>
    %62 = vector.shape_cast %61 : vector<1xf32> to vector<1x1x1xf32>
    %63 = vector.extract %62[0, 0, 0] : f32 from vector<1x1x1xf32>
    %cst_20 = arith.constant 0.000000e+00 : f32
    %64 = vector.broadcast %cst_20 : f32 to vector<1x128xf32>
    %65 = arith.select %14, %8, %64 : vector<1x128xi1>, vector<1x128xf32>
    %66 = vector.shape_cast %65 : vector<1x128xf32> to vector<1x1x128xf32>
    %cst_21 = arith.constant dense<0.000000e+00> : vector<1xf32>
    %67 = vector.multi_reduction <add>, %66, %cst_21 [1, 2] : vector<1x1x128xf32> to vector<1xf32>
    %68 = vector.shape_cast %67 : vector<1xf32> to vector<1x1x1xf32>
    %69 = vector.extract %68[0, 0, 0] : f32 from vector<1x1x1xf32>
    %cst_22 = arith.constant 1.000000e+00 : f32
    %70 = vector.broadcast %cst_22 : f32 to vector<1x128xf32>
    %71 = arith.subf %70, %8 : vector<1x128xf32>
    %72 = arith.mulf %71, %28 : vector<1x128xf32>
    %cst_23 = arith.constant 1.000000e+00 : f32
    %73 = vector.broadcast %cst_23 : f32 to vector<1x128xf32>
    %74 = arith.subf %73, %71 : vector<1x128xf32>
    %75 = arith.mulf %74, %51 : vector<1x128xf32>
    %76 = arith.addf %72, %75 : vector<1x128xf32>
    %cst_24 = arith.constant 0.000000e+00 : f32
    %77 = vector.broadcast %cst_24 : f32 to vector<1x128xf32>
    %78 = arith.subf %77, %76 : vector<1x128xf32>
    %cst_25 = arith.constant 0.000000e+00 : f32
    %79 = vector.broadcast %cst_25 : f32 to vector<1x128xf32>
    %80 = arith.select %14, %78, %79 : vector<1x128xi1>, vector<1x128xf32>
    %81 = vector.shape_cast %80 : vector<1x128xf32> to vector<1x1x128xf32>
    %cst_26 = arith.constant dense<0.000000e+00> : vector<1xf32>
    %82 = vector.multi_reduction <add>, %81, %cst_26 [1, 2] : vector<1x1x128xf32> to vector<1xf32>
    %83 = vector.shape_cast %82 : vector<1xf32> to vector<1x1x1xf32>
    %84 = vector.extract %83[0, 0, 0] : f32 from vector<1x1x1xf32>
    %cst_27 = arith.constant 0.000000e+00 : f32
    %85 = vector.broadcast %cst_27 : f32 to vector<1x128xf32>
    %86 = arith.subf %85, %42 : vector<1x128xf32>
    %87 = arith.subf %36, %45 : vector<1x128xf32>
    %88 = arith.mulf %8, %87 : vector<1x128xf32>
    %89 = arith.addf %86, %88 : vector<1x128xf32>
    %cst_28 = arith.constant 0.000000e+00 : f32
    %90 = vector.broadcast %cst_28 : f32 to vector<1x128xf32>
    %91 = arith.select %14, %89, %90 : vector<1x128xi1>, vector<1x128xf32>
    %92 = vector.shape_cast %91 : vector<1x128xf32> to vector<1x1x128xf32>
    %cst_29 = arith.constant dense<0.000000e+00> : vector<1xf32>
    %93 = vector.multi_reduction <add>, %92, %cst_29 [1, 2] : vector<1x1x128xf32> to vector<1xf32>
    %94 = vector.shape_cast %93 : vector<1xf32> to vector<1x1x1xf32>
    %95 = vector.extract %94[0, 0, 0] : f32 from vector<1x1x1xf32>
    %96 = tpu.iota {dimensions = array<i32: 1>} : vector<1x128xi32>
    %c0_i32 = arith.constant 0 : i32
    %97 = vector.broadcast %c0_i32 : i32 to vector<1x128xi32>
    %98 = arith.cmpi eq, %96, %97 : vector<1x128xi32>
    %cst_30 = arith.constant 0.000000e+00 : f32
    %99 = vector.broadcast %63 : f32 to vector<1x128xf32>
    %100 = vector.broadcast %cst_30 : f32 to vector<1x128xf32>
    %101 = arith.select %98, %99, %100 : vector<1x128xi1>, vector<1x128xf32>
    %c1_i32_31 = arith.constant 1 : i32
    %102 = vector.broadcast %c1_i32_31 : i32 to vector<1x128xi32>
    %103 = arith.cmpi eq, %96, %102 : vector<1x128xi32>
    %cst_32 = arith.constant 0.000000e+00 : f32
    %104 = vector.broadcast %69 : f32 to vector<1x128xf32>
    %105 = vector.broadcast %cst_32 : f32 to vector<1x128xf32>
    %106 = arith.select %103, %104, %105 : vector<1x128xi1>, vector<1x128xf32>
    %107 = arith.addf %101, %106 : vector<1x128xf32>
    %c2_i32 = arith.constant 2 : i32
    %108 = vector.broadcast %c2_i32 : i32 to vector<1x128xi32>
    %109 = arith.cmpi eq, %96, %108 : vector<1x128xi32>
    %cst_33 = arith.constant 0.000000e+00 : f32
    %110 = vector.broadcast %84 : f32 to vector<1x128xf32>
    %111 = vector.broadcast %cst_33 : f32 to vector<1x128xf32>
    %112 = arith.select %109, %110, %111 : vector<1x128xi1>, vector<1x128xf32>
    %113 = arith.addf %107, %112 : vector<1x128xf32>
    %c3_i32 = arith.constant 3 : i32
    %114 = vector.broadcast %c3_i32 : i32 to vector<1x128xi32>
    %115 = arith.cmpi eq, %96, %114 : vector<1x128xi32>
    %cst_34 = arith.constant 0.000000e+00 : f32
    %116 = vector.broadcast %95 : f32 to vector<1x128xf32>
    %117 = vector.broadcast %cst_34 : f32 to vector<1x128xf32>
    %118 = arith.select %115, %116, %117 : vector<1x128xi1>, vector<1x128xf32>
    %119 = arith.addf %113, %118 : vector<1x128xf32>
    %c0_35 = arith.constant 0 : index
    %c0_36 = arith.constant 0 : index
    %120 = vector.load %arg3[%c0_35, %c0_36] : memref<1x128xf32, #tpu.memory_space<vmem>>, vector<1x128xf32>
    tpu.vector_store %arg3[%c0_35, %c0_36], %119 {strides = array<i32>} : memref<1x128xf32, #tpu.memory_space<vmem>>, vector<1x128xf32>,
    return
  }
  func.func @transform_0(%arg0: i32) -> (i32, i32) {
    %c0_i32 = arith.constant 0 : i32
    %c0_i32_0 = arith.constant 0 : i32
    return %c0_i32, %arg0 : i32, i32
  }
  func.func @transform_1(%arg0: i32) -> (i32, i32) {
    %c0_i32 = arith.constant 0 : i32
    %c0_i32_0 = arith.constant 0 : i32
    return %c0_i32, %arg0 : i32, i32
  }
  func.func @transform_2(%arg0: i32) -> (i32, i32) {
    %c0_i32 = arith.constant 0 : i32
    %c0_i32_0 = arith.constant 0 : i32
    return %arg0, %c0_i32 : i32, i32
  }
}

</mosaic_0001>

<llo_original>
// kernel: tpu_custom_call.1
$region0: #{tpu_custom_call.1}
  #allocation0 [shape = 'u32[]', space=smem, size = 0x4, offset = 0x4, fixed_abs, tag = 'smem constant byte address 0x4 - core index']
  #allocation1 [shape = 'u32[144,128]{1,0:T(1,128)}', space=vmem, size = 0x12000, scoped, tag = 'internal scratch']
  %s0 = inlined_call_operand.hbm [shape: f32[16,128], index: 0, kind: input, shape index: {}]
  %s1 = inlined_call_operand.hbm [shape: f32[2,128], index: 1, kind: input, shape index: {}]
  %s2 = inlined_call_operand.hbm [shape: f32[1,128], index: 2, kind: output, shape index: {}]
  %s3 = sld [smem:[#allocation0]]
  $region26: #{tpu_custom_call.1} parent=0
    _
  %s5 = ssub.s32 1, %s3
  %s6 = scalar_select 0, %s5, %s3
  $region1: #{tpu_custom_call.1} parent=0
    #allocation2 [shape = 'u8[8192]{0}', space=vmem, size = 0x2000, scoped, tag = 'input window, operand 0, single buffered']
    #allocation3 [shape = 's32[1]{0}', space=sflag, size = 0x4, scoped, tag = 'scoped memory for tpu_custom_call.1']
    #allocation4 [shape = 's32[1]{0}', space=sflag, size = 0x4, scoped, tag = 'scoped memory for tpu_custom_call.1']
    #allocation5 [shape = 'u8[1024]{0}', space=vmem, size = 0x400, scoped, tag = 'input window, operand 1, single buffered']
    #allocation6 [shape = 's32[1]{0}', space=sflag, size = 0x4, scoped, tag = 'scoped memory for tpu_custom_call.1']
    #allocation7 [shape = 'u8[512]{0}', space=vmem, size = 0x400, scoped, tag = 'output window, operand 0, single buffered']
    %7 = vsyncpa [#allocation3], 0
    %8 = vsyncpa [#allocation6], 0
    %9 = vsyncpa [#allocation4], 0
    // Predicated region
    $region2: #{tpu_custom_call.1} parent=1 // pred_check
      _
    $region3: #{tpu_custom_call.1} parent=1 // pred_check_branch
      %11 = sbr.rel (0) target = $region5
    $region4: #{tpu_custom_call.1} parent=1 // pred_region
      %s13 = ssub.s32 256, 256
      %14 = vsyncadd [#allocation3], %s13
      %s15 = sshll.u32 [#allocation2], 4
      %s16 = int_to_ptr.vmem [resolvable:$true] %s15
      %21 = dma.hbm_to_vmem [thread:$0]  %s0, 256, %s16, [#allocation3], 128, 128, 8
    $region5: #{tpu_custom_call.1} parent=1 // pred_fallthru
      _
    // Predicated region
    $region6: #{tpu_custom_call.1} parent=1 // pred_check
      _
    $region7: #{tpu_custom_call.1} parent=1 // pred_check_branch
      %23 = sbr.rel (0) target = $region9
    $region8: #{tpu_custom_call.1} parent=1 // pred_region
      %s25 = ssub.s32 32, 32
      %26 = vsyncadd [#allocation6], %s25
      %s28 = sshll.u32 [#allocation5], 4
      %s29 = int_to_ptr.vmem [resolvable:$true] %s28
      %31 = dma.hbm_to_vmem [thread:$0]  %s1, 32, %s29, [#allocation6]
    $region9: #{tpu_custom_call.1} parent=1 // pred_fallthru
      _
    // Predicated region
    $region10: #{tpu_custom_call.1} parent=1 // pred_check
      _
    $region11: #{tpu_custom_call.1} parent=1 // pred_check_branch
      %33 = sbr.rel (0) target = $region13
    $region12: #{tpu_custom_call.1} parent=1 // pred_region
      %34 = dma.done [#allocation3], 256
    $region13: #{tpu_custom_call.1} parent=1 // pred_fallthru
      _
    // Predicated region
    $region14: #{tpu_custom_call.1} parent=1 // pred_check
      _
    $region15: #{tpu_custom_call.1} parent=1 // pred_check_branch
      %36 = sbr.rel (0) target = $region17
    $region16: #{tpu_custom_call.1} parent=1 // pred_region
      %37 = dma.done [#allocation6], 32
    $region17: #{tpu_custom_call.1} parent=1 // pred_fallthru
      _
    %v38 = vld [vmem:[#allocation2] sm:$0xff]
    %v39 = vld [vmem:[#allocation2 + $0x8] sm:$0xff]
    %v40 = vmax.f32 %v38, 1e-12
    %v41 = vmax.f32 %v39, 1e-12
    %v42 = vmin.f32 %v40, 0.999999
    %v43 = vmin.f32 %v41, 0.999999
    %v44 = vld [vmem:[#allocation5] sm:$0x3]
    %v45 = vcvt.f32.s32.to.zero.pseudo %v44
    %v46 = vlaneseq
    %v47 = vand.u32 %v46, 127
    %s48 = smul.u32 0, 128
    %v49 = vstv %s48
    %v50 = vadd.s32 %v49, %v47
    %vm51 = vcmp.lt.s32.totalorder %v50, 8
    %v52 = vlaneseq
    %v53 = vshrl.u32 %v52, 7
    %v54 = vadd.s32 %v53, 8
    %v55 = vsub.f32 0.0, %v42
    %v56 = vsub.f32 0.0, %v43
    %v57 = vadd.f32 %v55, 1.0
    %v58 = vlog2.pop %v57
    %v59 = vmul.f32 %v58, 0.6931472
    %v60 = vmul.f32 -0.5, %v55
    %v61 = vadd.f32 %v60, 1.0
    %v62 = vmul.f32 %v61, %v55
    %v63 = vand.u32 2147483647, %v55
    %vm64 = vcmp.lt.f32.partialorder %v63, 0.0004427343
    %v65 = vsel %vm64, %v62, %v59
    %v66 = vadd.f32 %v56, 1.0
    %v67 = vlog2.pop %v66
    %v68 = vmul.f32 %v67, 0.6931472
    %v69 = vmul.f32 -0.5, %v56
    %v70 = vadd.f32 %v69, 1.0
    %v71 = vmul.f32 %v70, %v56
    %v72 = vand.u32 2147483647, %v56
    %vm73 = vcmp.lt.f32.partialorder %v72, 0.0004427343
    %v74 = vsel %vm73, %v71, %v68
    %v75 = vlaneseq
    %v76 = vshrl.u32 %v75, 7
    %v77 = vsub.s32 0, %v76
    %v78 = vrot.slane %v45, %v77
    %vm79 = vcmp.eq.s32.totalorder %v53, %v78
    %vm80 = vcmp.eq.s32.totalorder %v54, %v78
    %v81 = vsub.s32 %v45, 1
    %v82 = vlaneseq
    %v83 = vshrl.u32 %v82, 7
    %v84 = vsub.s32 0, %v83
    %v85 = vrot.slane %v81, %v84
    %vm86 = vcmp.lt.s32.totalorder %v53, %v85
    %vm87 = vcmp.lt.s32.totalorder %v54, %v85
    %v88 = vsel %vm86, %v65, 0.0
    %v89 = vsel %vm87, %v74, 0.0
    %v90 = vadd.f32 %v88, %v89
    %v91 = vrot.slane %v90, 4
    %v92 = vadd.f32 %v90, %v91
    %v93 = vrot.slane %v92, 2
    %v94 = vadd.f32 %v92, %v93
    %v95 = vrot.slane %v94, 1
    %v96 = vadd.f32 %v94, %v95
    %v97 = vsel %vm79, %v42, 0.0
    %v98 = vsel %vm80, %v43, 0.0
    %v99 = vadd.f32 %v97, %v98
    %v100 = vrot.slane %v99, 4
    %v101 = vadd.f32 %v99, %v100
    %v102 = vrot.slane %v101, 2
    %v103 = vadd.f32 %v101, %v102
    %v104 = vrot.slane %v103, 1
    %v105 = vadd.f32 %v103, %v104
    %v106 = vsel %vm79, %v65, 0.0
    %v107 = vsel %vm80, %v74, 0.0
    %v108 = vadd.f32 %v106, %v107
    %v109 = vrot.slane %v108, 4
    %v110 = vadd.f32 %v108, %v109
    %v111 = vrot.slane %v110, 2
    %v112 = vadd.f32 %v110, %v111
    %v113 = vrot.slane %v112, 1
    %v114 = vadd.f32 %v112, %v113
    %vm115 = vcmp.le.s32.totalorder %v53, %v78
    %vm116 = vcmp.le.s32.totalorder %v54, %v78
    %v117 = vsel %vm115, %v65, 0.0
    %v118 = vsel %vm116, %v74, 0.0
    %v119 = vadd.f32 %v117, %v118
    %v120 = vrot.slane %v119, 4
    %v121 = vadd.f32 %v119, %v120
    %v122 = vrot.slane %v121, 2
    %v123 = vadd.f32 %v121, %v122
    %v124 = vrot.slane %v123, 1
    %v125 = vadd.f32 %v123, %v124
    %v126 = vmax.f32 %v105, 1e-12
    %v127 = vlog2.pop %v126
    %v128 = vmul.f32 %v127, 0.6931472
    %v129 = vmul.f32 %v96, 1.442695
    %v130 = vpow.pop %v129
    %v131 = vsub.f32 1.0, %v130
    %v132 = vmax.f32 %v131, 1e-08
    %v133 = vlog2.pop %v132
    %v134 = vmul.f32 %v133, 0.6931472
    %vm135 = vcmp.eq.f32.partialorder %v44, 1.0
    %vm136 = vmand %vm51, %vm135
    %v137 = vadd.f32 %v128, %v96
    %v138 = vsub.f32 0.0, %v137
    %v139 = vsel %vm136, %v138, 0.0
    %v141 = vrot.slane %v139, 1
    %vm143 = vcmask 1040384
    %v144 = vsel %vm143, %v141, 0.0
    %145 = vadd.xlane.f32.xlu0 %v144
    %v146 = vpop.xlane.xlu0 %145
    %v147 = vrot.slane %v146, 4
    %v148 = vadd.f32 %v146, %v147
    %v149 = vrot.slane %v148, 2
    %v150 = vadd.f32 %v148, %v149
    %v151 = vrot.slane %v150, 1
    %v152 = vadd.f32 %v150, %v151
    %s153 = vtos %v152
    %v154 = vsel %vm51, %v44, 0.0
    %v156 = vrot.slane %v154, 1
    %v158 = vsel %vm143, %v156, 0.0
    %159 = vadd.xlane.f32.xlu0 %v158
    %v160 = vpop.xlane.xlu0 %159
    %v161 = vrot.slane %v160, 4
    %v162 = vadd.f32 %v160, %v161
    %v163 = vrot.slane %v162, 2
    %v164 = vadd.f32 %v162, %v163
    %v165 = vrot.slane %v164, 1
    %v166 = vadd.f32 %v164, %v165
    %s167 = vtos %v166
    %v168 = vsub.f32 1.0, %v44
    %v169 = vmul.f32 %v168, %v96
    %v170 = vsub.f32 1.0, %v168
    %v171 = vmul.f32 %v170, %v134
    %v172 = vadd.f32 %v169, %v171
    %v173 = vsub.f32 0.0, %v172
    %v174 = vsel %vm51, %v173, 0.0
    %v176 = vrot.slane %v174, 1
    %v178 = vsel %vm143, %v176, 0.0
    %179 = vadd.xlane.f32.xlu0 %v178
    %v180 = vpop.xlane.xlu0 %179
    %v181 = vrot.slane %v180, 4
    %v182 = vadd.f32 %v180, %v181
    %v183 = vrot.slane %v182, 2
    %v184 = vadd.f32 %v182, %v183
    %v185 = vrot.slane %v184, 1
    %v186 = vadd.f32 %v184, %v185
    %s187 = vtos %v186
    %v188 = vsub.f32 0.0, %v125
    %v189 = vsub.f32 %v114, %v128
    %v190 = vmul.f32 %v44, %v189
    %v191 = vadd.f32 %v188, %v190
    %v192 = vsel %vm51, %v191, 0.0
    %v194 = vrot.slane %v192, 1
    %v196 = vsel %vm143, %v194, 0.0
    %197 = vadd.xlane.f32.xlu0 %v196
    %v198 = vpop.xlane.xlu0 %197
    %v199 = vrot.slane %v198, 4
    %v200 = vadd.f32 %v198, %v199
    %v201 = vrot.slane %v200, 2
    %v202 = vadd.f32 %v200, %v201
    %v203 = vrot.slane %v202, 1
    %v204 = vadd.f32 %v202, %v203
    %s205 = vtos %v204
    %vm206 = vcmp.eq.s32.totalorder %v47, 0
    %v207 = vstv %s153
    %v208 = vsel %vm206, %v207, 0.0
    %vm209 = vcmp.eq.s32.totalorder %v47, 1
    %v210 = vstv %s167
    %v211 = vsel %vm209, %v210, 0.0
    %v212 = vadd.f32 %v208, %v211
    %vm213 = vcmp.eq.s32.totalorder %v47, 2
    %v214 = vstv %s187
    %v215 = vsel %vm213, %v214, 0.0
    %v216 = vadd.f32 %v212, %v215
    %vm217 = vcmp.eq.s32.totalorder %v47, 3
    %v218 = vstv %s205
    %v219 = vsel %vm217, %v218, 0.0
    %v220 = vadd.f32 %v216, %v219
    %221 = vst [vmem:[#allocation7] sm:$0x1] %v220
    // Predicated region
    $region18: #{tpu_custom_call.1} parent=1 // pred_check
      _
    $region19: #{tpu_custom_call.1} parent=1 // pred_check_branch
      %223 = sbr.rel (0) target = $region21
    $region20: #{tpu_custom_call.1} parent=1 // pred_region
      %s225 = ssub.s32 16, 16
      %226 = vsyncadd [#allocation4], %s225
      %s228 = sshll.u32 [#allocation7], 4
      %s229 = int_to_ptr.vmem [resolvable:$true] %s228
      %231 = dma.vmem_to_hbm [thread:$0]  %s229, 16, %s2, [#allocation4]
    $region21: #{tpu_custom_call.1} parent=1 // pred_fallthru
      _
    // Predicated region
    $region22: #{tpu_custom_call.1} parent=1 // pred_check
      _
    $region23: #{tpu_custom_call.1} parent=1 // pred_check_branch
      %233 = sbr.rel (0) target = $region25
    $region24: #{tpu_custom_call.1} parent=1 // pred_region
      %234 = dma.done [#allocation4], 16
    $region25: #{tpu_custom_call.1} parent=1 // pred_fallthru
      _
    %235 = vsyncpa [#allocation3], 1
    %236 = vsyncpa [#allocation6], 1
    %237 = vsyncpa [#allocation4], 1

</llo_original>
